<compile_context>
chip_gen: v7x
topology: tpu7x:2x2x1
jax: 0.10.0
libtpu: 0.0.40
codegen_flags: <defaults>
</compile_context>

<pallas_src>
import functools

import jax
import jax.numpy as jnp
from jax.experimental import pallas as pl
from jax.experimental.pallas import tpu as pltpu


def _cdiv(a, b):
    return -(-a // b)


def _round_up(x, m):
    return _cdiv(x, m) * m


def _vmem_capacity_bytes():
    """Physical VMEM per TensorCore (falls back to 128 MiB if unknown)."""
    try:
        info = pltpu.get_tpu_info()
        return int(getattr(info, "vmem_capacity_bytes", 128 * 1024 * 1024))
    except Exception:
        return 128 * 1024 * 1024


def _bf16_eltwise_ok():
    """True on chips with bf16 VPU/EUP (v6e / v7x); False on v5e and older."""
    try:
        kind = jax.devices()[0].device_kind.lower()
    except Exception:
        return False
    return not any(tag in kind for tag in ("v2", "v3", "v4", "v5"))


def _attention_kernel(seq_ref, vec_ref, mask_ref,
                      wseq_ref, wvec_ref, b_ref, vblk_ref,
                      expand_ref, sum_ref, out_ref, *, tanh_dtype):
    # seq_ref   : (T, W*D1)   storage dtype  (word-major, lane-dense)
    # vec_ref   : (T, D2)     storage dtype
    # mask_ref  : (T, W)      int32 (0 = masked)
    # wseq_ref  : (W*D1, W*H) kron(I_W, Wseq)       storage dtype
    # wvec_ref  : (D2, W*H)   tile(Wvec, W)         vector dtype
    # b_ref     : (1, W*H)    tile(b, W)            f32
    # vblk_ref  : (W*H, W)    kron(I_W, v)          tanh_dtype
    # expand_ref: (W, W*D1)   kron(I_W, ones(D1))   f32
    # sum_ref   : (W*D1, D1)  tile(I_D1, (W, 1))    f32
    # out_ref   : (T, D1)     storage dtype

    # Per-word linear layer: block-diagonal matmul keeps the word-major lane
    # layout, so there is no (T*W, D1) <-> (T, W, D1) relayout anywhere.
    lin = jnp.dot(seq_ref[...], wseq_ref[...],
                  preferred_element_type=jnp.float32)              # (T, W*H)
    lin = lin + jnp.dot(vec_ref[...], wvec_ref[...],
                        preferred_element_type=jnp.float32)        # vec part, word-tiled
    lin = lin + b_ref[...]
    z = jnp.tanh(lin.astype(tanh_dtype))                           # EUP, lane-dense

    # <v, tanh(.)> reduction over H on the MXU (block-diag v) -> per-word score.
    score = jnp.dot(z, vblk_ref[...], preferred_element_type=jnp.float32)   # (T, W)
    score = jnp.where(mask_ref[...] == 0, jnp.float32(-1e9), score)

    # softmax over word positions
    score = score - jnp.max(score, axis=-1, keepdims=True)
    e = jnp.exp(score)
    alphas = e * pl.reciprocal(jnp.sum(e, axis=-1, keepdims=True), approx=True)

    # Weighted sum of word vectors, still lane-dense: expand alphas to the
    # word-major layout, scale, then sum over words via the MXU.
    alphas_rep = jnp.dot(alphas, expand_ref[...],
                         preferred_element_type=jnp.float32)       # (T, W*D1)
    weighted = alphas_rep * seq_ref[...].astype(jnp.float32)       # (T, W*D1)
    out_ref[...] = jnp.dot(weighted, sum_ref[...],
                           preferred_element_type=jnp.float32).astype(out_ref.dtype)


def attention_layer(sequence, vector, char_masks, w_lin, b_lin, v_param):
    """sequence: (B, S, W, D1), vector: (B, S, D2), char_masks: (B, S, W) int,
       w_lin: (H, D1+D2) (PyTorch nn.Linear weight layout), b_lin: (H,),
       v_param: (H,).  Returns (B, S, D1) in sequence.dtype.

       No per-call casts of the large inputs are performed: pass bf16 arrays to
       run the bf16 storage path (halves HBM traffic on every generation)."""
    B, S, W, D1 = sequence.shape
    D2 = vector.shape[-1]
    H = v_param.shape[0]
    BS = B * S

    storage_dtype = sequence.dtype
    out_dtype = sequence.dtype
    tanh_dtype = (jnp.bfloat16
                  if (storage_dtype == jnp.bfloat16 and _bf16_eltwise_ok())
                  else jnp.float32)

    # ---- generation-aware tiling --------------------------------------------
    vmem_cap = _vmem_capacity_bytes()
    vmem_limit = int(min(64 * 1024 * 1024, (vmem_cap * 3) // 4))   # 48 MiB on v7x
    max_rows = 1024 if vmem_cap >= 128 * 1024 * 1024 else 512
    sub = 8 * max(1, 4 // jnp.dtype(storage_dtype).itemsize)       # 8 f32 / 16 bf16

    if BS <= max_rows:
        row_tile, num_tiles = BS, 1                 # single full-extent block
    else:
        num_tiles = _round_up(_cdiv(BS, max_rows), 2)   # even -> both v7x TCs busy
        row_tile = _round_up(_cdiv(BS, num_tiles), sub)
        num_tiles = _cdiv(BS, row_tile)             # ragged last block, no pad copy

    # ---- big inputs: pure reshapes only (no pad, no dtype casts) ------------
    seq2d = sequence.reshape(BS, W * D1)            # word-major, lane-dense
    vec2d = vector.reshape(BS, D2)
    mask2d = char_masks.reshape(BS, W)
    if mask2d.dtype.itemsize != 4:                  # keep 32-bit tiling friendly
        mask2d = mask2d.astype(jnp.int32)

    # ---- tiny constant matrices (built once, stay VMEM-resident) ------------
    w_t = jnp.transpose(w_lin).astype(jnp.float32)                      # (D1+D2, H)
    w_seq, w_vec = w_t[:D1], w_t[D1:]
    eye_w = jnp.eye(W, dtype=jnp.float32)
    wseq_blk = jnp.kron(eye_w, w_seq).astype(storage_dtype)             # (W*D1, W*H)
    wvec_til = jnp.tile(w_vec, (1, W)).astype(vector.dtype)             # (D2, W*H)
    b_til = jnp.tile(b_lin.reshape(1, H).astype(jnp.float32), (1, W))   # (1, W*H)
    v_blk = jnp.kron(eye_w,
                     v_param.reshape(H, 1).astype(jnp.float32)).astype(tanh_dtype)  # (W*H, W)
    expand = jnp.kron(eye_w, jnp.ones((1, D1), jnp.float32))            # (W, W*D1)
    summat = jnp.tile(jnp.eye(D1, dtype=jnp.float32), (W, 1))           # (W*D1, D1)

    # TODO(synk): output block stays (row_tile, D1) (masked stores when D1 < 128);
    # a lane-dense output repack needs an in-kernel relayout and was deferred.
    kernel = functools.partial(_attention_kernel, tanh_dtype=tanh_dtype)
    out = pl.pallas_call(
        kernel,
        out_shape=jax.ShapeDtypeStruct((BS, D1), out_dtype),
        grid_spec=pltpu.PrefetchScalarGridSpec(
            num_scalar_prefetch=0,
            grid=(num_tiles,),
            in_specs=[
                pl.BlockSpec((row_tile, W * D1), lambda i: (i, 0)),
                pl.BlockSpec((row_tile, D2), lambda i: (i, 0)),
                pl.BlockSpec((row_tile, W), lambda i: (i, 0)),
                # Constant block index -> fetched once, resident across the grid.
                pl.BlockSpec((W * D1, W * H), lambda i: (0, 0)),
                pl.BlockSpec((D2, W * H), lambda i: (0, 0)),
                pl.BlockSpec((1, W * H), lambda i: (0, 0)),
                pl.BlockSpec((W * H, W), lambda i: (0, 0)),
                pl.BlockSpec((W, W * D1), lambda i: (0, 0)),
                pl.BlockSpec((W * D1, D1), lambda i: (0, 0)),
            ],
            out_specs=pl.BlockSpec((row_tile, D1), lambda i: (i, 0)),
        ),
        compiler_params=pltpu.CompilerParams(
            dimension_semantics=("parallel",),
            vmem_limit_bytes=vmem_limit,
        ),
    )(seq2d, vec2d, mask2d, wseq_blk, wvec_til, b_til, v_blk, expand, summat)

    return out.reshape(B, S, D1)


def attention_layer_ref(sequence, vector, char_masks, w_lin, b_lin, v_param):
    """Pure-JAX reference mirroring the PyTorch forward exactly."""
    B, S, W, D1 = sequence.shape
    vec_b = jnp.broadcast_to(vector[:, :, None, :], (B, S, W, vector.shape[-1]))
    concatted = jnp.concatenate([sequence, vec_b], axis=3)
    lin = jnp.tanh(jnp.einsum('bswd,hd->bswh', concatted, w_lin) + b_lin)
    score = jnp.einsum('bswh,h->bsw', lin, v_param)
    score = jnp.where(char_masks == 0, -1e9, score)
    alphas = jax.nn.softmax(score, axis=2)
    return jnp.einsum('bsw,bswd->bsd', alphas, sequence)


if __name__ == "__main__":
    B, S, W, D1, D2, H = 2, 8, 8, 16, 16, 32   # input_dim = D1+D2 = 32, output_dim = 32

    key = jax.random.PRNGKey(0)
    k_seq, k_vec, k_mask, k_w, k_b, k_v = jax.random.split(key, 6)

    sequence = jax.random.normal(k_seq, (B, S, W, D1), dtype=jnp.float32)
    vector = jax.random.normal(k_vec, (B, S, D2), dtype=jnp.float32)
    # mask: 1 = keep, 0 = masked; guarantee at least the first position is kept
    char_masks = (jax.random.uniform(k_mask, (B, S, W)) > 0.3).astype(jnp.int32)
    char_masks = char_masks.at[:, :, 0].set(1)

    bound = 1.0 / jnp.sqrt(jnp.float32(D1 + D2))
    w_lin = jax.random.uniform(k_w, (H, D1 + D2), minval=-bound, maxval=bound,
                               dtype=jnp.float32)
    b_lin = jax.random.uniform(k_b, (H,), minval=-bound, maxval=bound,
                               dtype=jnp.float32)
    v_param = jax.random.uniform(k_v, (H,), minval=-0.01, maxval=0.01,
                                 dtype=jnp.float32)

    # ---- f32 storage path ----------------------------------------------------
    out = jax.block_until_ready(
        attention_layer(sequence, vector, char_masks, w_lin, b_lin, v_param))
    ref = attention_layer_ref(sequence, vector, char_masks, w_lin, b_lin, v_param)
    assert out.shape == (B, S, D1)
    # Tolerance covers the approximate EUP reciprocal and MXU matmul rounding.
    assert jnp.allclose(out, ref, atol=2e-2, rtol=2e-2), "f32 kernel mismatch vs reference"

    # ---- bf16 storage path: inputs are ALREADY bf16 (no wrapper cast) --------
    seq_bf16 = sequence.astype(jnp.bfloat16)
    vec_bf16 = vector.astype(jnp.bfloat16)
    out_bf16 = jax.block_until_ready(
        attention_layer(seq_bf16, vec_bf16, char_masks, w_lin, b_lin, v_param))
    rnd = lambda x: x.astype(jnp.bfloat16).astype(jnp.float32)
    ref_bf16 = attention_layer_ref(rnd(sequence), rnd(vector), char_masks,
                                   rnd(w_lin), b_lin, v_param)
    assert out_bf16.shape == (B, S, D1)
    assert out_bf16.dtype == jnp.bfloat16
    assert jnp.allclose(out_bf16.astype(jnp.float32), ref_bf16, atol=3e-2, rtol=3e-2), \
        "bf16 kernel mismatch vs reference"

    print("KERNEL_OK")
</pallas_src>

<mosaic_0001>
module attributes {stable_mosaic.version = 11 : i64} {
  func.func @_attention_kernel(%arg0: i32, %arg1: memref<16x128xf32, #tpu.memory_space<vmem>>, %arg2: memref<16x16xf32, #tpu.memory_space<vmem>>, %arg3: memref<16x8xi32, #tpu.memory_space<vmem>>, %arg4: memref<128x256xf32, #tpu.memory_space<vmem>>, %arg5: memref<16x256xf32, #tpu.memory_space<vmem>>, %arg6: memref<1x256xf32, #tpu.memory_space<vmem>>, %arg7: memref<256x8xf32, #tpu.memory_space<vmem>>, %arg8: memref<8x128xf32, #tpu.memory_space<vmem>>, %arg9: memref<128x16xf32, #tpu.memory_space<vmem>>, %arg10: memref<16x16xf32, #tpu.memory_space<vmem>>) attributes {dimension_semantics = [#tpu.dimension_semantics<parallel>], iteration_bounds = array<i64: 1>, scalar_prefetch = 0 : i64, scratch_operands = 0 : i64, tpu.core_type = #tpu.core_type<tc>, window_params = [{transform_indices = @transform_0, window_bounds = array<i64: 16, 128>}, {transform_indices = @transform_1, window_bounds = array<i64: 16, 16>}, {transform_indices = @transform_2, window_bounds = array<i64: 16, 8>}, {pipeline_mode = #tpu.pipeline_mode<synchronous>, transform_indices = @transform_3, window_bounds = array<i64: 128, 256>}, {pipeline_mode = #tpu.pipeline_mode<synchronous>, transform_indices = @transform_4, window_bounds = array<i64: 16, 256>}, {pipeline_mode = #tpu.pipeline_mode<synchronous>, transform_indices = @transform_5, window_bounds = array<i64: 1, 256>}, {pipeline_mode = #tpu.pipeline_mode<synchronous>, transform_indices = @transform_6, window_bounds = array<i64: 256, 8>}, {pipeline_mode = #tpu.pipeline_mode<synchronous>, transform_indices = @transform_7, window_bounds = array<i64: 8, 128>}, {pipeline_mode = #tpu.pipeline_mode<synchronous>, transform_indices = @transform_8, window_bounds = array<i64: 128, 16>}, {transform_indices = @transform_9, window_bounds = array<i64: 16, 16>}]} {
    %c0 = arith.constant 0 : index
    %c0_0 = arith.constant 0 : index
    %0 = vector.load %arg1[%c0, %c0_0] : memref<16x128xf32, #tpu.memory_space<vmem>>, vector<16x128xf32>
    %c0_1 = arith.constant 0 : index
    %c0_2 = arith.constant 0 : index
    %1 = vector.load %arg4[%c0_1, %c0_2] : memref<128x256xf32, #tpu.memory_space<vmem>>, vector<128x256xf32>
    %cst = arith.constant dense<0.000000e+00> : vector<16x256xf32>
    %2 = tpu.matmul %0, %1, %cst {dimension_numbers = #tpu.dot_dimension_numbers<[1], [0], [0], [1], [0, 0, 1, 1], [], []>} : vector<16x128xf32>, vector<128x256xf32>, vector<16x256xf32> -> vector<16x256xf32>
    %c0_3 = arith.constant 0 : index
    %c0_4 = arith.constant 0 : index
    %3 = vector.load %arg2[%c0_3, %c0_4] : memref<16x16xf32, #tpu.memory_space<vmem>>, vector<16x16xf32>
    %c0_5 = arith.constant 0 : index
    %c0_6 = arith.constant 0 : index
    %4 = vector.load %arg5[%c0_5, %c0_6] : memref<16x256xf32, #tpu.memory_space<vmem>>, vector<16x256xf32>
    %cst_7 = arith.constant dense<0.000000e+00> : vector<16x256xf32>
    %5 = tpu.matmul %3, %4, %cst_7 {dimension_numbers = #tpu.dot_dimension_numbers<[1], [0], [0], [1], [0, 0, 1, 1], [], []>} : vector<16x16xf32>, vector<16x256xf32>, vector<16x256xf32> -> vector<16x256xf32>
    %6 = arith.addf %2, %5 : vector<16x256xf32>
    %c0_8 = arith.constant 0 : index
    %c0_9 = arith.constant 0 : index
    %7 = vector.load %arg6[%c0_8, %c0_9] : memref<1x256xf32, #tpu.memory_space<vmem>>, vector<1x256xf32>
    %8 = vector.broadcast %7 : vector<1x256xf32> to vector<16x256xf32>
    %9 = arith.addf %6, %8 : vector<16x256xf32>
    %10 = math.tanh %9 : vector<16x256xf32>
    %c0_10 = arith.constant 0 : index
    %c0_11 = arith.constant 0 : index
    %11 = vector.load %arg7[%c0_10, %c0_11] : memref<256x8xf32, #tpu.memory_space<vmem>>, vector<256x8xf32>
    %cst_12 = arith.constant dense<0.000000e+00> : vector<16x8xf32>
    %12 = tpu.matmul %10, %11, %cst_12 {dimension_numbers = #tpu.dot_dimension_numbers<[1], [0], [0], [1], [0, 0, 1, 1], [], []>} : vector<16x256xf32>, vector<256x8xf32>, vector<16x8xf32> -> vector<16x8xf32>
    %c0_13 = arith.constant 0 : index
    %c0_14 = arith.constant 0 : index
    %13 = vector.load %arg3[%c0_13, %c0_14] : memref<16x8xi32, #tpu.memory_space<vmem>>, vector<16x8xi32>
    %c0_i32 = arith.constant 0 : i32
    %14 = vector.broadcast %c0_i32 : i32 to vector<16x8xi32>
    %15 = arith.cmpi eq, %13, %14 : vector<16x8xi32>
    %cst_15 = arith.constant -1.000000e+09 : f32
    %16 = vector.broadcast %cst_15 : f32 to vector<16x8xf32>
    %17 = arith.select %15, %16, %12 : vector<16x8xi1>, vector<16x8xf32>
    %cst_16 = arith.constant dense<0xFF800000> : vector<16xf32>
    %18 = vector.multi_reduction <maximumf>, %17, %cst_16 [1] : vector<16x8xf32> to vector<16xf32>
    %19 = vector.shape_cast %18 : vector<16xf32> to vector<16x1xf32>
    %20 = vector.broadcast %19 : vector<16x1xf32> to vector<16x8xf32>
    %21 = arith.subf %17, %20 : vector<16x8xf32>
    %22 = math.exp %21 : vector<16x8xf32>
    %cst_17 = arith.constant dense<0.000000e+00> : vector<16xf32>
    %23 = vector.multi_reduction <add>, %22, %cst_17 [1] : vector<16x8xf32> to vector<16xf32>
    %24 = vector.shape_cast %23 : vector<16xf32> to vector<16x1xf32>
    %25 = tpu.reciprocal %24 {approx = true} : vector<16x1xf32> -> vector<16x1xf32>
    %26 = vector.broadcast %25 : vector<16x1xf32> to vector<16x8xf32>
    %27 = arith.mulf %22, %26 : vector<16x8xf32>
    %c0_18 = arith.constant 0 : index
    %c0_19 = arith.constant 0 : index
    %28 = vector.load %arg8[%c0_18, %c0_19] : memref<8x128xf32, #tpu.memory_space<vmem>>, vector<8x128xf32>
    %cst_20 = arith.constant dense<0.000000e+00> : vector<16x128xf32>
    %29 = tpu.matmul %27, %28, %cst_20 {dimension_numbers = #tpu.dot_dimension_numbers<[1], [0], [0], [1], [0, 0, 1, 1], [], []>} : vector<16x8xf32>, vector<8x128xf32>, vector<16x128xf32> -> vector<16x128xf32>
    %c0_21 = arith.constant 0 : index
    %c0_22 = arith.constant 0 : index
    %30 = vector.load %arg1[%c0_21, %c0_22] : memref<16x128xf32, #tpu.memory_space<vmem>>, vector<16x128xf32>
    %31 = arith.mulf %29, %30 : vector<16x128xf32>
    %c0_23 = arith.constant 0 : index
    %c0_24 = arith.constant 0 : index
    %32 = vector.load %arg9[%c0_23, %c0_24] : memref<128x16xf32, #tpu.memory_space<vmem>>, vector<128x16xf32>
    %cst_25 = arith.constant dense<0.000000e+00> : vector<16x16xf32>
    %33 = tpu.matmul %31, %32, %cst_25 {dimension_numbers = #tpu.dot_dimension_numbers<[1], [0], [0], [1], [0, 0, 1, 1], [], []>} : vector<16x128xf32>, vector<128x16xf32>, vector<16x16xf32> -> vector<16x16xf32>
    %c0_26 = arith.constant 0 : index
    %c0_27 = arith.constant 0 : index
    %34 = vector.load %arg10[%c0_26, %c0_27] : memref<16x16xf32, #tpu.memory_space<vmem>>, vector<16x16xf32>
    tpu.vector_store %arg10[%c0_26, %c0_27], %33 {strides = array<i32>} : memref<16x16xf32, #tpu.memory_space<vmem>>, vector<16x16xf32>,
    return
  }
  func.func @transform_0(%arg0: i32) -> (i32, i32) {
    %c0_i32 = arith.constant 0 : i32
    %c0_i32_0 = arith.constant 0 : i32
    return %arg0, %c0_i32 : i32, i32
  }
  func.func @transform_1(%arg0: i32) -> (i32, i32) {
    %c0_i32 = arith.constant 0 : i32
    %c0_i32_0 = arith.constant 0 : i32
    return %arg0, %c0_i32 : i32, i32
  }
  func.func @transform_2(%arg0: i32) -> (i32, i32) {
    %c0_i32 = arith.constant 0 : i32
    %c0_i32_0 = arith.constant 0 : i32
    return %arg0, %c0_i32 : i32, i32
  }
  func.func @transform_3(%arg0: i32) -> (i32, i32) {
    %c0_i32 = arith.constant 0 : i32
    %c0_i32_0 = arith.constant 0 : i32
    %c0_i32_1 = arith.constant 0 : i32
    return %c0_i32, %c0_i32_0 : i32, i32
  }
  func.func @transform_4(%arg0: i32) -> (i32, i32) {
    %c0_i32 = arith.constant 0 : i32
    %c0_i32_0 = arith.constant 0 : i32
    %c0_i32_1 = arith.constant 0 : i32
    return %c0_i32, %c0_i32_0 : i32, i32
  }
  func.func @transform_5(%arg0: i32) -> (i32, i32) {
    %c0_i32 = arith.constant 0 : i32
    %c0_i32_0 = arith.constant 0 : i32
    %c0_i32_1 = arith.constant 0 : i32
    return %c0_i32, %c0_i32_0 : i32, i32
  }
  func.func @transform_6(%arg0: i32) -> (i32, i32) {
    %c0_i32 = arith.constant 0 : i32
    %c0_i32_0 = arith.constant 0 : i32
    %c0_i32_1 = arith.constant 0 : i32
    return %c0_i32, %c0_i32_0 : i32, i32
  }
  func.func @transform_7(%arg0: i32) -> (i32, i32) {
    %c0_i32 = arith.constant 0 : i32
    %c0_i32_0 = arith.constant 0 : i32
    %c0_i32_1 = arith.constant 0 : i32
    return %c0_i32, %c0_i32_0 : i32, i32
  }
  func.func @transform_8(%arg0: i32) -> (i32, i32) {
    %c0_i32 = arith.constant 0 : i32
    %c0_i32_0 = arith.constant 0 : i32
    %c0_i32_1 = arith.constant 0 : i32
    return %c0_i32, %c0_i32_0 : i32, i32
  }
  func.func @transform_9(%arg0: i32) -> (i32, i32) {
    %c0_i32 = arith.constant 0 : i32
    %c0_i32_0 = arith.constant 0 : i32
    return %arg0, %c0_i32 : i32, i32
  }
}

</mosaic_0001>

<llo_original>
// kernel: tpu_custom_call.1
$region0: #{tpu_custom_call.1}
  #allocation0 [shape = 'u32[]', space=smem, size = 0x4, offset = 0x4, fixed_abs, tag = 'smem constant byte address 0x4 - core index']
  #allocation1 [shape = 'u32[144,128]{1,0:T(1,128)}', space=vmem, size = 0x12000, scoped, tag = 'internal scratch']
  %s0 = inlined_call_operand.hbm [shape: f32[16,128], index: 0, kind: input, shape index: {}]
  %s1 = inlined_call_operand.hbm [shape: f32[16,16], index: 1, kind: input, shape index: {}]
  %s2 = inlined_call_operand.hbm [shape: s32[16,8], index: 2, kind: input, shape index: {}]
  %s3 = inlined_call_operand.hbm [shape: f32[128,256], index: 3, kind: input, shape index: {}]
  %s4 = inlined_call_operand.hbm [shape: f32[16,256], index: 4, kind: input, shape index: {}]
  %s5 = inlined_call_operand.hbm [shape: f32[1,256], index: 5, kind: input, shape index: {}]
  %s6 = inlined_call_operand.hbm [shape: f32[256,8], index: 6, kind: input, shape index: {}]
  %s7 = inlined_call_operand.hbm [shape: f32[8,128], index: 7, kind: input, shape index: {}]
  %s8 = inlined_call_operand.hbm [shape: f32[128,16], index: 8, kind: input, shape index: {}]
  %s9 = inlined_call_operand.hbm [shape: f32[16,16], index: 9, kind: output, shape index: {}]
  %s10 = sld [smem:[#allocation0]]
  $region82: #{tpu_custom_call.1} parent=0
    _
  %s12 = ssub.s32 1, %s10
  %s13 = scalar_select 0, %s12, %s10
  $region1: #{tpu_custom_call.1} parent=0
    #allocation2 [shape = 'u8[8192]{0}', space=vmem, size = 0x2000, scoped, tag = 'input window, operand 0, single buffered']
    #allocation3 [shape = 's32[1]{0}', space=sflag, size = 0x4, scoped, tag = 'scoped memory for tpu_custom_call.1']
    #allocation4 [shape = 's32[1]{0}', space=sflag, size = 0x4, scoped, tag = 'scoped memory for tpu_custom_call.1']
    #allocation5 [shape = 'u8[8192]{0}', space=vmem, size = 0x2000, scoped, tag = 'input window, operand 1, single buffered']
    #allocation6 [shape = 's32[1]{0}', space=sflag, size = 0x4, scoped, tag = 'scoped memory for tpu_custom_call.1']
    #allocation7 [shape = 'u8[8192]{0}', space=vmem, size = 0x2000, scoped, tag = 'input window, operand 2, single buffered']
    #allocation8 [shape = 'u8[131072]{0}', space=vmem, size = 0x20000, scoped, tag = 'input window, operand 3, single buffered']
    #allocation9 [shape = 's32[1]{0}', space=sflag, size = 0x4, scoped, tag = 'scoped memory for tpu_custom_call.1']
    #allocation10 [shape = 'u8[16384]{0}', space=vmem, size = 0x4000, scoped, tag = 'input window, operand 4, single buffered']
    #allocation11 [shape = 'u8[1024]{0}', space=vmem, size = 0x400, scoped, tag = 'input window, operand 5, single buffered']
    #allocation12 [shape = 's32[1]{0}', space=sflag, size = 0x4, scoped, tag = 'scoped memory for tpu_custom_call.1']
    #allocation13 [shape = 'u8[131072]{0}', space=vmem, size = 0x20000, scoped, tag = 'input window, operand 6, single buffered']
    #allocation14 [shape = 'u8[4096]{0}', space=vmem, size = 0x1000, scoped, tag = 'input window, operand 7, single buffered']
    #allocation15 [shape = 's32[1]{0}', space=sflag, size = 0x4, scoped, tag = 'scoped memory for tpu_custom_call.1']
    #allocation16 [shape = 'u8[65536]{0}', space=vmem, size = 0x10000, scoped, tag = 'input window, operand 8, single buffered']
    #allocation17 [shape = 'u8[8192]{0}', space=vmem, size = 0x2000, scoped, tag = 'output window, operand 0, single buffered']
    %14 = vsyncpa [#allocation3], 0
    %15 = vsyncpa [#allocation6], 0
    %16 = vsyncpa [#allocation9], 0
    %17 = vsyncpa [#allocation12], 0
    %18 = vsyncpa [#allocation15], 0
    %19 = vsyncpa [#allocation4], 0
    // Predicated region
    $region2: #{tpu_custom_call.1} parent=1 // pred_check
      _
    $region3: #{tpu_custom_call.1} parent=1 // pred_check_branch
      %21 = sbr.rel (0) target = $region5
    $region4: #{tpu_custom_call.1} parent=1 // pred_region
      %s23 = ssub.s32 256, 256
      %24 = vsyncadd [#allocation3], %s23
      %s25 = sshll.u32 [#allocation2], 4
      %s26 = int_to_ptr.vmem [resolvable:$true] %s25
      %31 = dma.hbm_to_vmem [thread:$0]  %s0, 256, %s26, [#allocation3], 128, 128, 8
    $region5: #{tpu_custom_call.1} parent=1 // pred_fallthru
      _
    // Predicated region
    $region6: #{tpu_custom_call.1} parent=1 // pred_check
      _
    $region7: #{tpu_custom_call.1} parent=1 // pred_check_branch
      %33 = sbr.rel (0) target = $region9
    $region8: #{tpu_custom_call.1} parent=1 // pred_region
      %s35 = ssub.s32 256, 256
      %36 = vsyncadd [#allocation6], %s35
      %s37 = sshll.u32 [#allocation5], 4
      %s38 = int_to_ptr.vmem [resolvable:$true] %s37
      %43 = dma.hbm_to_vmem [thread:$0]  %s1, 256, %s38, [#allocation6], 128, 128, 8
    $region9: #{tpu_custom_call.1} parent=1 // pred_fallthru
      _
    // Predicated region
    $region10: #{tpu_custom_call.1} parent=1 // pred_check
      _
    $region11: #{tpu_custom_call.1} parent=1 // pred_check_branch
      %45 = sbr.rel (0) target = $region13
    $region12: #{tpu_custom_call.1} parent=1 // pred_region
      %s47 = ssub.s32 256, 256
      %48 = vsyncadd [#allocation6], %s47
      %s49 = sshll.u32 [#allocation7], 4
      %s50 = int_to_ptr.vmem [resolvable:$true] %s49
      %55 = dma.hbm_to_vmem [thread:$0]  %s2, 256, %s50, [#allocation6], 128, 128, 8
    $region13: #{tpu_custom_call.1} parent=1 // pred_fallthru
      _
    // Predicated region
    $region14: #{tpu_custom_call.1} parent=1 // pred_check
      _
    $region15: #{tpu_custom_call.1} parent=1 // pred_check_branch
      %57 = sbr.rel (0) target = $region17
    $region16: #{tpu_custom_call.1} parent=1 // pred_region
      %s59 = ssub.s32 4096, 4096
      %60 = vsyncadd [#allocation9], %s59
      %s61 = sshll.u32 [#allocation8], 4
      %s62 = int_to_ptr.vmem [resolvable:$true] %s61
      %67 = dma.hbm_to_vmem [thread:$0]  %s3, 4096, %s62, [#allocation9], 256, 256, 16
    $region17: #{tpu_custom_call.1} parent=1 // pred_fallthru
      _
    // Predicated region
    $region18: #{tpu_custom_call.1} parent=1 // pred_check
      _
    $region19: #{tpu_custom_call.1} parent=1 // pred_check_branch
      %69 = sbr.rel (0) target = $region21
    $region20: #{tpu_custom_call.1} parent=1 // pred_region
      %s71 = ssub.s32 512, 512
      %72 = vsyncadd [#allocation9], %s71
      %s73 = sshll.u32 [#allocation10], 4
      %s74 = int_to_ptr.vmem [resolvable:$true] %s73
      %79 = dma.hbm_to_vmem [thread:$0]  %s4, 512, %s74, [#allocation9], 256, 256, 16
    $region21: #{tpu_custom_call.1} parent=1 // pred_fallthru
      _
    // Predicated region
    $region22: #{tpu_custom_call.1} parent=1 // pred_check
      _
    $region23: #{tpu_custom_call.1} parent=1 // pred_check_branch
      %81 = sbr.rel (0) target = $region25
    $region24: #{tpu_custom_call.1} parent=1 // pred_region
      %s83 = ssub.s32 32, 32
      %84 = vsyncadd [#allocation12], %s83
      %s86 = sshll.u32 [#allocation11], 4
      %s87 = int_to_ptr.vmem [resolvable:$true] %s86
      %89 = dma.hbm_to_vmem [thread:$0]  %s5, 32, %s87, [#allocation12]
    $region25: #{tpu_custom_call.1} parent=1 // pred_fallthru
      _
    // Predicated region
    $region26: #{tpu_custom_call.1} parent=1 // pred_check
      _
    $region27: #{tpu_custom_call.1} parent=1 // pred_check_branch
      %91 = sbr.rel (0) target = $region29
    $region28: #{tpu_custom_call.1} parent=1 // pred_region
      %s93 = ssub.s32 4096, 4096
      %94 = vsyncadd [#allocation12], %s93
      %s95 = sshll.u32 [#allocation13], 4
      %s96 = int_to_ptr.vmem [resolvable:$true] %s95
      %101 = dma.hbm_to_vmem [thread:$0]  %s6, 4096, %s96, [#allocation12], 128, 128, 8
    $region29: #{tpu_custom_call.1} parent=1 // pred_fallthru
      _
    // Predicated region
    $region30: #{tpu_custom_call.1} parent=1 // pred_check
      _
    $region31: #{tpu_custom_call.1} parent=1 // pred_check_branch
      %103 = sbr.rel (0) target = $region33
    $region32: #{tpu_custom_call.1} parent=1 // pred_region
      %s105 = ssub.s32 128, 128
      %106 = vsyncadd [#allocation15], %s105
      %s108 = sshll.u32 [#allocation14], 4
      %s109 = int_to_ptr.vmem [resolvable:$true] %s108
      %111 = dma.hbm_to_vmem [thread:$0]  %s7, 128, %s109, [#allocation15]
    $region33: #{tpu_custom_call.1} parent=1 // pred_fallthru
      _
    // Predicated region
    $region34: #{tpu_custom_call.1} parent=1 // pred_check
      _
    $region35: #{tpu_custom_call.1} parent=1 // pred_check_branch
      %113 = sbr.rel (0) target = $region37
    $region36: #{tpu_custom_call.1} parent=1 // pred_region
      %s115 = ssub.s32 2048, 2048
      %116 = vsyncadd [#allocation15], %s115
      %s117 = sshll.u32 [#allocation16], 4
      %s118 = int_to_ptr.vmem [resolvable:$true] %s117
      %123 = dma.hbm_to_vmem [thread:$0]  %s8, 2048, %s118, [#allocation15], 128, 128, 8
    $region37: #{tpu_custom_call.1} parent=1 // pred_fallthru
      _
    // Predicated region
    $region38: #{tpu_custom_call.1} parent=1 // pred_check
      _
    $region39: #{tpu_custom_call.1} parent=1 // pred_check_branch
      %125 = sbr.rel (0) target = $region41
    $region40: #{tpu_custom_call.1} parent=1 // pred_region
      %126 = dma.done [#allocation3], 256
    $region41: #{tpu_custom_call.1} parent=1 // pred_fallthru
      _
    // Predicated region
    $region42: #{tpu_custom_call.1} parent=1 // pred_check
      _
    $region43: #{tpu_custom_call.1} parent=1 // pred_check_branch
      %128 = sbr.rel (0) target = $region45
    $region44: #{tpu_custom_call.1} parent=1 // pred_region
      %129 = dma.done [#allocation6], 256
    $region45: #{tpu_custom_call.1} parent=1 // pred_fallthru
      _
    // Predicated region
    $region46: #{tpu_custom_call.1} parent=1 // pred_check
      _
    $region47: #{tpu_custom_call.1} parent=1 // pred_check_branch
      %131 = sbr.rel (0) target = $region49
    $region48: #{tpu_custom_call.1} parent=1 // pred_region
      %132 = dma.done [#allocation6], 256
    $region49: #{tpu_custom_call.1} parent=1 // pred_fallthru
      _
    // Predicated region
    $region50: #{tpu_custom_call.1} parent=1 // pred_check
      _
    $region51: #{tpu_custom_call.1} parent=1 // pred_check_branch
      %134 = sbr.rel (0) target = $region53
    $region52: #{tpu_custom_call.1} parent=1 // pred_region
      %135 = dma.done [#allocation9], 4096
    $region53: #{tpu_custom_call.1} parent=1 // pred_fallthru
      _
    // Predicated region
    $region54: #{tpu_custom_call.1} parent=1 // pred_check
      _
    $region55: #{tpu_custom_call.1} parent=1 // pred_check_branch
      %137 = sbr.rel (0) target = $region57
    $region56: #{tpu_custom_call.1} parent=1 // pred_region
      %138 = dma.done [#allocation9], 512
    $region57: #{tpu_custom_call.1} parent=1 // pred_fallthru
      _
    // Predicated region
    $region58: #{tpu_custom_call.1} parent=1 // pred_check
      _
    $region59: #{tpu_custom_call.1} parent=1 // pred_check_branch
      %140 = sbr.rel (0) target = $region61
    $region60: #{tpu_custom_call.1} parent=1 // pred_region
      %141 = dma.done [#allocation12], 32
    $region61: #{tpu_custom_call.1} parent=1 // pred_fallthru
      _
    // Predicated region
    $region62: #{tpu_custom_call.1} parent=1 // pred_check
      _
    $region63: #{tpu_custom_call.1} parent=1 // pred_check_branch
      %143 = sbr.rel (0) target = $region65
    $region64: #{tpu_custom_call.1} parent=1 // pred_region
      %144 = dma.done [#allocation12], 4096
    $region65: #{tpu_custom_call.1} parent=1 // pred_fallthru
      _
    // Predicated region
    $region66: #{tpu_custom_call.1} parent=1 // pred_check
      _
    $region67: #{tpu_custom_call.1} parent=1 // pred_check_branch
      %146 = sbr.rel (0) target = $region69
    $region68: #{tpu_custom_call.1} parent=1 // pred_region
      %147 = dma.done [#allocation15], 128
    $region69: #{tpu_custom_call.1} parent=1 // pred_fallthru
      _
    // Predicated region
    $region70: #{tpu_custom_call.1} parent=1 // pred_check
      _
    $region71: #{tpu_custom_call.1} parent=1 // pred_check_branch
      %149 = sbr.rel (0) target = $region73
    $region72: #{tpu_custom_call.1} parent=1 // pred_region
      %150 = dma.done [#allocation15], 2048
    $region73: #{tpu_custom_call.1} parent=1 // pred_fallthru
      _
    %v151 = vld [vmem:[#allocation2] sm:$0xff]
    %v152 = vld [vmem:[#allocation2 + $0x8] sm:$0xff]
    %v153 = vld [vmem:[#allocation8] sm:$0xff]
    %v154 = vld [vmem:[#allocation8 + $0x8] sm:$0xff]
    %v155 = vld [vmem:[#allocation8 + $0x10] sm:$0xff]
    %v156 = vld [vmem:[#allocation8 + $0x18] sm:$0xff]
    %v157 = vld [vmem:[#allocation8 + $0x20] sm:$0xff]
    %v158 = vld [vmem:[#allocation8 + $0x28] sm:$0xff]
    %v159 = vld [vmem:[#allocation8 + $0x30] sm:$0xff]
    %v160 = vld [vmem:[#allocation8 + $0x38] sm:$0xff]
    %v161 = vld [vmem:[#allocation8 + $0x40] sm:$0xff]
    %v162 = vld [vmem:[#allocation8 + $0x48] sm:$0xff]
    %v163 = vld [vmem:[#allocation8 + $0x50] sm:$0xff]
    %v164 = vld [vmem:[#allocation8 + $0x58] sm:$0xff]
    %v165 = vld [vmem:[#allocation8 + $0x60] sm:$0xff]
    %v166 = vld [vmem:[#allocation8 + $0x68] sm:$0xff]
    %v167 = vld [vmem:[#allocation8 + $0x70] sm:$0xff]
    %v168 = vld [vmem:[#allocation8 + $0x78] sm:$0xff]
    %v169 = vld [vmem:[#allocation8 + $0x80] sm:$0xff]
    %v170 = vld [vmem:[#allocation8 + $0x88] sm:$0xff]
    %v171 = vld [vmem:[#allocation8 + $0x90] sm:$0xff]
    %v172 = vld [vmem:[#allocation8 + $0x98] sm:$0xff]
    %v173 = vld [vmem:[#allocation8 + $0xa0] sm:$0xff]
    %v174 = vld [vmem:[#allocation8 + $0xa8] sm:$0xff]
    %v175 = vld [vmem:[#allocation8 + $0xb0] sm:$0xff]
    %v176 = vld [vmem:[#allocation8 + $0xb8] sm:$0xff]
    %v177 = vld [vmem:[#allocation8 + $0xc0] sm:$0xff]
    %v178 = vld [vmem:[#allocation8 + $0xc8] sm:$0xff]
    %v179 = vld [vmem:[#allocation8 + $0xd0] sm:$0xff]
    %v180 = vld [vmem:[#allocation8 + $0xd8] sm:$0xff]
    %v181 = vld [vmem:[#allocation8 + $0xe0] sm:$0xff]
    %v182 = vld [vmem:[#allocation8 + $0xe8] sm:$0xff]
    %v183 = vld [vmem:[#allocation8 + $0xf0] sm:$0xff]
    %v184 = vld [vmem:[#allocation8 + $0xf8] sm:$0xff]
    %v185 = vld [vmem:[#allocation5] sm:$0xff]
    %v186 = vld [vmem:[#allocation5 + $0x8] sm:$0xff]
    %v187 = vld [vmem:[#allocation10] sm:$0xff]
    %v188 = vld [vmem:[#allocation10 + $0x8] sm:$0xff]
    %v189 = vld [vmem:[#allocation10 + $0x10] sm:$0xff]
    %v190 = vld [vmem:[#allocation10 + $0x18] sm:$0xff]
    %vm191 = vcmask 130048
    %v193 = vsel %vm191, %v185, 0
    %v196 = vsel %vm191, %v186, 0
    %198 = vmatprep.subr.mxu0 %v188
    %199 = vmatpush1.msra.mxu0 %v187
    %200 = vmatprep.subr.mxu0 %v190
    %201 = vmatpush1.msra.mxu0 %v189
    %202 = vmatprep.subr.mxu0 0.0
    %203 = vmatpush1.msra.mxu0 0.0
    %204 = vmatprep.subr.mxu0 0.0
    %205 = vmatpush1.msra.mxu0 0.0
    %206 = vmatprep.subr.mxu0 0.0
    %207 = vmatpush1.msra.mxu0 0.0
    %208 = vmatprep.subr.mxu0 0.0
    %209 = vmatpush1.msra.mxu0 0.0
    %210 = vmatprep.subr.mxu0 0.0
    %211 = vmatpush1.msra.mxu0 0.0
    %212 = vmatprep.subr.mxu0 0.0
    %213 = vmatpush1.msra.mxu0 0.0
    %214 = vmatprep.subr.mxu0 0.0
    %215 = vmatpush1.msra.mxu0 0.0
    %216 = vmatprep.subr.mxu0 0.0
    %217 = vmatpush1.msra.mxu0 0.0
    %218 = vmatprep.subr.mxu0 0.0
    %219 = vmatpush1.msra.mxu0 0.0
    %220 = vmatprep.subr.mxu0 0.0
    %221 = vmatpush1.msra.mxu0 0.0
    %222 = vmatprep.subr.mxu0 0.0
    %223 = vmatpush1.msra.mxu0 0.0
    %224 = vmatprep.subr.mxu0 0.0
    %225 = vmatpush1.msra.mxu0 0.0
    %226 = vmatprep.subr.mxu0 0.0
    %227 = vmatpush1.msra.mxu0 0.0
    %228 = vmatprep.subr.mxu0 0.0
    %229 = vmatpush1.msra.mxu0 0.0
    %230 = vmatprep.subr.mxu0 0.0
    %231 = vmatpush1.msra.mxu0 0.0
    %232 = vmatprep.subr.mxu0 0.0
    %233 = vmatpush1.msra.mxu0 0.0
    %234 = vmatprep.subr.mxu0 0.0
    %235 = vmatpush1.msra.mxu0 0.0
    %236 = vmatprep.subr.mxu0 0.0
    %237 = vmatpush1.msra.mxu0 0.0
    %238 = vmatprep.subr.mxu0 0.0
    %239 = vmatpush1.msra.mxu0 0.0
    %240 = vmatprep.subr.mxu0 0.0
    %241 = vmatpush1.msra.mxu0 0.0
    %242 = vmatprep.subr.mxu0 0.0
    %243 = vmatpush1.msra.mxu0 0.0
    %244 = vmatprep.subr.mxu0 0.0
    %245 = vmatpush1.msra.mxu0 0.0
    %246 = vmatprep.subr.mxu0 0.0
    %247 = vmatpush1.msra.mxu0 0.0
    %248 = vmatprep.subr.mxu0 0.0
    %249 = vmatpush1.msra.mxu0 0.0
    %250 = vmatprep.subr.mxu0 0.0
    %251 = vmatpush1.msra.mxu0 0.0
    %252 = vmatprep.subr.mxu0 0.0
    %253 = vmatpush1.msra.mxu0 0.0
    %254 = vmatprep.subr.mxu0 0.0
    %255 = vmatpush1.msra.mxu0 0.0
    %256 = vmatprep.subr.mxu0 0.0
    %257 = vmatpush1.msra.mxu0 0.0
    %258 = vmatprep.subr.mxu0 0.0
    %259 = vmatpush1.msra.mxu0 0.0
    %260 = vmatprep.subr.mxu0 0.0
    %261 = vmatpush1.msra.mxu0 0.0
    %262 = vmatprep.mubr.f32.mxu0 0.0
    %263 = vmatmul.mubr.f32.gmra.mrb[0].mxu0 %v193
    %v264 = vpop.f32.mrb[0].mxu0
    %v265 = vadd.f32 0.0, %v264
    %v266 = vpop.f32.mrb[0].mxu0
    %v267 = vadd.f32 0.0, %v266
    %268 = vmatprep.mubr.f32.mxu0 0.0
    %269 = vmatmul.mubr.f32.gmra.mrb[0].mxu0 %v196
    %v270 = vpop.f32.mrb[0].mxu0
    %v271 = vadd.f32 0.0, %v270
    %v272 = vpop.f32.mrb[0].mxu0
    %v273 = vadd.f32 0.0, %v272
    %274 = vdwg.mxu0
    %275 = vmatprep.subr.mxu0 %v154
    %276 = vmatpush1.msra.mxu0 %v153
    %277 = vmatprep.subr.mxu0 %v156
    %278 = vmatpush1.msra.mxu0 %v155
    %279 = vmatprep.subr.mxu0 %v158
    %280 = vmatpush1.msra.mxu0 %v157
    %281 = vmatprep.subr.mxu0 %v160
    %282 = vmatpush1.msra.mxu0 %v159
    %283 = vmatprep.subr.mxu0 %v162
    %284 = vmatpush1.msra.mxu0 %v161
    %285 = vmatprep.subr.mxu0 %v164
    %286 = vmatpush1.msra.mxu0 %v163
    %287 = vmatprep.subr.mxu0 %v166
    %288 = vmatpush1.msra.mxu0 %v165
    %289 = vmatprep.subr.mxu0 %v168
    %290 = vmatpush1.msra.mxu0 %v167
    %291 = vmatprep.subr.mxu0 %v170
    %292 = vmatpush1.msra.mxu0 %v169
    %293 = vmatprep.subr.mxu0 %v172
    %294 = vmatpush1.msra.mxu0 %v171
    %295 = vmatprep.subr.mxu0 %v174
    %296 = vmatpush1.msra.mxu0 %v173
    %297 = vmatprep.subr.mxu0 %v176
    %298 = vmatpush1.msra.mxu0 %v175
    %299 = vmatprep.subr.mxu0 %v178
    %300 = vmatpush1.msra.mxu0 %v177
    %301 = vmatprep.subr.mxu0 %v180
    %302 = vmatpush1.msra.mxu0 %v179
    %303 = vmatprep.subr.mxu0 %v182
    %304 = vmatpush1.msra.mxu0 %v181
    %305 = vmatprep.subr.mxu0 %v184
    %306 = vmatpush1.msra.mxu0 %v183
    %307 = vmatprep.subr.mxu0 0.0
    %308 = vmatpush1.msra.mxu0 0.0
    %309 = vmatprep.subr.mxu0 0.0
    %310 = vmatpush1.msra.mxu0 0.0
    %311 = vmatprep.subr.mxu0 0.0
    %312 = vmatpush1.msra.mxu0 0.0
    %313 = vmatprep.subr.mxu0 0.0
    %314 = vmatpush1.msra.mxu0 0.0
    %315 = vmatprep.subr.mxu0 0.0
    %316 = vmatpush1.msra.mxu0 0.0
    %317 = vmatprep.subr.mxu0 0.0
    %318 = vmatpush1.msra.mxu0 0.0
    %319 = vmatprep.subr.mxu0 0.0
    %320 = vmatpush1.msra.mxu0 0.0
    %321 = vmatprep.subr.mxu0 0.0
    %322 = vmatpush1.msra.mxu0 0.0
    %323 = vmatprep.subr.mxu0 0.0
    %324 = vmatpush1.msra.mxu0 0.0
    %325 = vmatprep.subr.mxu0 0.0
    %326 = vmatpush1.msra.mxu0 0.0
    %327 = vmatprep.subr.mxu0 0.0
    %328 = vmatpush1.msra.mxu0 0.0
    %329 = vmatprep.subr.mxu0 0.0
    %330 = vmatpush1.msra.mxu0 0.0
    %331 = vmatprep.subr.mxu0 0.0
    %332 = vmatpush1.msra.mxu0 0.0
    %333 = vmatprep.subr.mxu0 0.0
    %334 = vmatpush1.msra.mxu0 0.0
    %335 = vmatprep.subr.mxu0 0.0
    %336 = vmatpush1.msra.mxu0 0.0
    %337 = vmatprep.subr.mxu0 0.0
    %338 = vmatpush1.msra.mxu0 0.0
    %339 = vmatprep.mubr.f32.mxu0 0.0
    %340 = vmatmul.mubr.f32.gmra.mrb[0].mxu0 %v151
    %v341 = vpop.f32.mrb[0].mxu0
    %v342 = vadd.f32 %v265, %v341
    %v343 = vpop.f32.mrb[0].mxu0
    %v344 = vadd.f32 %v267, %v343
    %345 = vmatprep.mubr.f32.mxu0 0.0
    %346 = vmatmul.mubr.f32.gmra.mrb[0].mxu0 %v152
    %v347 = vpop.f32.mrb[0].mxu0
    %v348 = vadd.f32 %v271, %v347
    %v349 = vpop.f32.mrb[0].mxu0
    %v350 = vadd.f32 %v273, %v349
    %351 = vdwg.mxu0
    %v352 = vld [vmem:[#allocation11] sm:$0x3]
    %v354 = vlaneseq
    %v355 = vshrl.u32 %v354, 7
    %v356 = vsub.s32 0, %v355
    %v357 = vrot.slane %v352, %v356
    %v358 = vlaneseq
    %v359 = vshrl.u32 %v358, 7
    %v360 = vsub.s32 1, %v359
    %v361 = vrot.slane %v352, %v360
    %v364 = vadd.f32 %v342, %v357
    %v365 = vadd.f32 %v344, %v361
    %v366 = vadd.f32 %v348, %v357
    %v367 = vadd.f32 %v350, %v361
    %v368 = vtanh.pop %v364
    %v369 = vtanh.pop %v365
    %v370 = vtanh.pop %v366
    %v371 = vtanh.pop %v367
    %v372 = vld [vmem:[#allocation13] sm:$0xff]
    %v373 = vld [vmem:[#allocation13 + $0x8] sm:$0xff]
    %v374 = vld [vmem:[#allocation13 + $0x10] sm:$0xff]
    %v375 = vld [vmem:[#allocation13 + $0x18] sm:$0xff]
    %v376 = vld [vmem:[#allocation13 + $0x20] sm:$0xff]
    %v377 = vld [vmem:[#allocation13 + $0x28] sm:$0xff]
    %v378 = vld [vmem:[#allocation13 + $0x30] sm:$0xff]
    %v379 = vld [vmem:[#allocation13 + $0x38] sm:$0xff]
    %v380 = vld [vmem:[#allocation13 + $0x40] sm:$0xff]
    %v381 = vld [vmem:[#allocation13 + $0x48] sm:$0xff]
    %v382 = vld [vmem:[#allocation13 + $0x50] sm:$0xff]
    %v383 = vld [vmem:[#allocation13 + $0x58] sm:$0xff]
    %v384 = vld [vmem:[#allocation13 + $0x60] sm:$0xff]
    %v385 = vld [vmem:[#allocation13 + $0x68] sm:$0xff]
    %v386 = vld [vmem:[#allocation13 + $0x70] sm:$0xff]
    %v387 = vld [vmem:[#allocation13 + $0x78] sm:$0xff]
    %v388 = vld [vmem:[#allocation13 + $0x80] sm:$0xff]
    %v389 = vld [vmem:[#allocation13 + $0x88] sm:$0xff]
    %v390 = vld [vmem:[#allocation13 + $0x90] sm:$0xff]
    %v391 = vld [vmem:[#allocation13 + $0x98] sm:$0xff]
    %v392 = vld [vmem:[#allocation13 + $0xa0] sm:$0xff]
    %v393 = vld [vmem:[#allocation13 + $0xa8] sm:$0xff]
    %v394 = vld [vmem:[#allocation13 + $0xb0] sm:$0xff]
    %v395 = vld [vmem:[#allocation13 + $0xb8] sm:$0xff]
    %v396 = vld [vmem:[#allocation13 + $0xc0] sm:$0xff]
    %v397 = vld [vmem:[#allocation13 + $0xc8] sm:$0xff]
    %v398 = vld [vmem:[#allocation13 + $0xd0] sm:$0xff]
    %v399 = vld [vmem:[#allocation13 + $0xd8] sm:$0xff]
    %v400 = vld [vmem:[#allocation13 + $0xe0] sm:$0xff]
    %v401 = vld [vmem:[#allocation13 + $0xe8] sm:$0xff]
    %v402 = vld [vmem:[#allocation13 + $0xf0] sm:$0xff]
    %v403 = vld [vmem:[#allocation13 + $0xf8] sm:$0xff]
    %404 = vmatprep.subr.mxu0 0.0
    %405 = vmatpush1.msra.mxu0 %v372
    %406 = vmatprep.subr.mxu0 0.0
    %407 = vmatpush1.msra.mxu0 %v373
    %408 = vmatprep.subr.mxu0 0.0
    %409 = vmatpush1.msra.mxu0 %v374
    %410 = vmatprep.subr.mxu0 0.0
    %411 = vmatpush1.msra.mxu0 %v375
    %412 = vmatprep.subr.mxu0 0.0
    %413 = vmatpush1.msra.mxu0 %v376
    %414 = vmatprep.subr.mxu0 0.0
    %415 = vmatpush1.msra.mxu0 %v377
    %416 = vmatprep.subr.mxu0 0.0
    %417 = vmatpush1.msra.mxu0 %v378
    %418 = vmatprep.subr.mxu0 0.0
    %419 = vmatpush1.msra.mxu0 %v379
    %420 = vmatprep.subr.mxu0 0.0
    %421 = vmatpush1.msra.mxu0 %v380
    %422 = vmatprep.subr.mxu0 0.0
    %423 = vmatpush1.msra.mxu0 %v381
    %424 = vmatprep.subr.mxu0 0.0
    %425 = vmatpush1.msra.mxu0 %v382
    %426 = vmatprep.subr.mxu0 0.0
    %427 = vmatpush1.msra.mxu0 %v383
    %428 = vmatprep.subr.mxu0 0.0
    %429 = vmatpush1.msra.mxu0 %v384
    %430 = vmatprep.subr.mxu0 0.0
    %431 = vmatpush1.msra.mxu0 %v385
    %432 = vmatprep.subr.mxu0 0.0
    %433 = vmatpush1.msra.mxu0 %v386
    %434 = vmatprep.subr.mxu0 0.0
    %435 = vmatpush1.msra.mxu0 %v387
    %436 = vmatprep.subr.mxu0 0.0
    %437 = vmatpush1.msra.mxu0 %v388
    %438 = vmatprep.subr.mxu0 0.0
    %439 = vmatpush1.msra.mxu0 %v389
    %440 = vmatprep.subr.mxu0 0.0
    %441 = vmatpush1.msra.mxu0 %v390
    %442 = vmatprep.subr.mxu0 0.0
    %443 = vmatpush1.msra.mxu0 %v391
    %444 = vmatprep.subr.mxu0 0.0
    %445 = vmatpush1.msra.mxu0 %v392
    %446 = vmatprep.subr.mxu0 0.0
    %447 = vmatpush1.msra.mxu0 %v393
    %448 = vmatprep.subr.mxu0 0.0
    %449 = vmatpush1.msra.mxu0 %v394
    %450 = vmatprep.subr.mxu0 0.0
    %451 = vmatpush1.msra.mxu0 %v395
    %452 = vmatprep.subr.mxu0 0.0
    %453 = vmatpush1.msra.mxu0 %v396
    %454 = vmatprep.subr.mxu0 0.0
    %455 = vmatpush1.msra.mxu0 %v397
    %456 = vmatprep.subr.mxu0 0.0
    %457 = vmatpush1.msra.mxu0 %v398
    %458 = vmatprep.subr.mxu0 0.0
    %459 = vmatpush1.msra.mxu0 %v399
    %460 = vmatprep.subr.mxu0 0.0
    %461 = vmatpush1.msra.mxu0 %v400
    %462 = vmatprep.subr.mxu0 0.0
    %463 = vmatpush1.msra.mxu0 %v401
    %464 = vmatprep.subr.mxu0 0.0
    %465 = vmatpush1.msra.mxu0 %v402
    %466 = vmatprep.subr.mxu0 0.0
    %467 = vmatpush1.msra.mxu0 %v403
    %468 = vmatprep.mubr.f32.mxu0 %v369
    %469 = vmatmul.mubr.f32.gmra.mrb[0].mxu0 %v368
    %v470 = vpop.f32.mrb[0].mxu0
    %v471 = vadd.f32 0.0, %v470
    %v472 = vpop.f32.mrb[0].mxu0
    %473 = vmatprep.mubr.f32.mxu0 %v371
    %474 = vmatmul.mubr.f32.gmra.mrb[0].mxu0 %v370
    %v475 = vpop.f32.mrb[0].mxu0
    %v476 = vadd.f32 0.0, %v475
    %v477 = vpop.f32.mrb[0].mxu0
    %478 = vdwg.mxu0
    %v479 = vld [vmem:[#allocation7] sm:$0xff]
    %v480 = vld [vmem:[#allocation7 + $0x8] sm:$0xff]
    %vm481 = vcmp.eq.s32.totalorder %v479, 0
    %vm482 = vcmp.eq.s32.totalorder %v480, 0
    %v483 = vsel %vm481, -1e+09, %v471
    %v484 = vsel %vm482, -1e+09, %v476
    %vm485 = vcmask 64512
    %v486 = vsel %vm485, %v483, -inf
    %487 = vmax.xlane.f32.xlu0 %v486
    %v488 = vpop.xlane.xlu0 %487
    %v489 = vsel %vm485, %v484, -inf
    %490 = vmax.xlane.f32.xlu0 %v489
    %v491 = vpop.xlane.xlu0 %490
    %v492 = vsub.f32 %v483, %v488
    %v493 = vsub.f32 %v484, %v491
    %v494 = vmul.f32 %v492, 1.442695
    %v495 = vpow.pop %v494
    %v496 = vmul.f32 %v493, 1.442695
    %v497 = vpow.pop %v496
    %v498 = vsel %vm485, %v495, 0.0
    %499 = vadd.xlane.f32.xlu0 %v498
    %v500 = vpop.xlane.xlu0 %499
    %v501 = vsel %vm485, %v497, 0.0
    %502 = vadd.xlane.f32.xlu0 %v501
    %v503 = vpop.xlane.xlu0 %502
    %v504 = vrcp.pop %v500
    %v505 = vrcp.pop %v503
    %v506 = vmul.f32 %v495, %v504
    %v507 = vmul.f32 %v497, %v505
    %v508 = vld [vmem:[#allocation14] sm:$0xff]
    %v510 = vsel %vm485, %v506, 0
    %v513 = vsel %vm485, %v507, 0
    %515 = vmatprep.subr.mxu0 0.0
    %516 = vmatpush1.msra.mxu0 %v508
    %517 = vmatprep.subr.mxu0 0.0
    %518 = vmatpush1.msra.mxu0 0.0
    %519 = vmatprep.subr.mxu0 0.0
    %520 = vmatpush1.msra.mxu0 0.0
    %521 = vmatprep.subr.mxu0 0.0
    %522 = vmatpush1.msra.mxu0 0.0
    %523 = vmatprep.subr.mxu0 0.0
    %524 = vmatpush1.msra.mxu0 0.0
    %525 = vmatprep.subr.mxu0 0.0
    %526 = vmatpush1.msra.mxu0 0.0
    %527 = vmatprep.subr.mxu0 0.0
    %528 = vmatpush1.msra.mxu0 0.0
    %529 = vmatprep.subr.mxu0 0.0
    %530 = vmatpush1.msra.mxu0 0.0
    %531 = vmatprep.subr.mxu0 0.0
    %532 = vmatpush1.msra.mxu0 0.0
    %533 = vmatprep.subr.mxu0 0.0
    %534 = vmatpush1.msra.mxu0 0.0
    %535 = vmatprep.subr.mxu0 0.0
    %536 = vmatpush1.msra.mxu0 0.0
    %537 = vmatprep.subr.mxu0 0.0
    %538 = vmatpush1.msra.mxu0 0.0
    %539 = vmatprep.subr.mxu0 0.0
    %540 = vmatpush1.msra.mxu0 0.0
    %541 = vmatprep.subr.mxu0 0.0
    %542 = vmatpush1.msra.mxu0 0.0
    %543 = vmatprep.subr.mxu0 0.0
    %544 = vmatpush1.msra.mxu0 0.0
    %545 = vmatprep.subr.mxu0 0.0
    %546 = vmatpush1.msra.mxu0 0.0
    %547 = vmatprep.subr.mxu0 0.0
    %548 = vmatpush1.msra.mxu0 0.0
    %549 = vmatprep.subr.mxu0 0.0
    %550 = vmatpush1.msra.mxu0 0.0
    %551 = vmatprep.subr.mxu0 0.0
    %552 = vmatpush1.msra.mxu0 0.0
    %553 = vmatprep.subr.mxu0 0.0
    %554 = vmatpush1.msra.mxu0 0.0
    %555 = vmatprep.subr.mxu0 0.0
    %556 = vmatpush1.msra.mxu0 0.0
    %557 = vmatprep.subr.mxu0 0.0
    %558 = vmatpush1.msra.mxu0 0.0
    %559 = vmatprep.subr.mxu0 0.0
    %560 = vmatpush1.msra.mxu0 0.0
    %561 = vmatprep.subr.mxu0 0.0
    %562 = vmatpush1.msra.mxu0 0.0
    %563 = vmatprep.subr.mxu0 0.0
    %564 = vmatpush1.msra.mxu0 0.0
    %565 = vmatprep.subr.mxu0 0.0
    %566 = vmatpush1.msra.mxu0 0.0
    %567 = vmatprep.subr.mxu0 0.0
    %568 = vmatpush1.msra.mxu0 0.0
    %569 = vmatprep.subr.mxu0 0.0
    %570 = vmatpush1.msra.mxu0 0.0
    %571 = vmatprep.subr.mxu0 0.0
    %572 = vmatpush1.msra.mxu0 0.0
    %573 = vmatprep.subr.mxu0 0.0
    %574 = vmatpush1.msra.mxu0 0.0
    %575 = vmatprep.subr.mxu0 0.0
    %576 = vmatpush1.msra.mxu0 0.0
    %577 = vmatprep.subr.mxu0 0.0
    %578 = vmatpush1.msra.mxu0 0.0
    %579 = vmatprep.mubr.f32.mxu0 0.0
    %580 = vmatmul.mubr.f32.gmra.mrb[0].mxu0 %v510
    %v581 = vpop.f32.mrb[0].mxu0
    %v582 = vadd.f32 0.0, %v581
    %v583 = vpop.f32.mrb[0].mxu0
    %584 = vmatprep.mubr.f32.mxu0 0.0
    %585 = vmatmul.mubr.f32.gmra.mrb[0].mxu0 %v513
    %v586 = vpop.f32.mrb[0].mxu0
    %v587 = vadd.f32 0.0, %v586
    %v588 = vpop.f32.mrb[0].mxu0
    %589 = vdwg.mxu0
    %v590 = vmul.f32 %v582, %v151
    %v591 = vmul.f32 %v587, %v152
    %v592 = vld [vmem:[#allocation16] sm:$0xff]
    %v593 = vld [vmem:[#allocation16 + $0x8] sm:$0xff]
    %v594 = vld [vmem:[#allocation16 + $0x10] sm:$0xff]
    %v595 = vld [vmem:[#allocation16 + $0x18] sm:$0xff]
    %v596 = vld [vmem:[#allocation16 + $0x20] sm:$0xff]
    %v597 = vld [vmem:[#allocation16 + $0x28] sm:$0xff]
    %v598 = vld [vmem:[#allocation16 + $0x30] sm:$0xff]
    %v599 = vld [vmem:[#allocation16 + $0x38] sm:$0xff]
    %v600 = vld [vmem:[#allocation16 + $0x40] sm:$0xff]
    %v601 = vld [vmem:[#allocation16 + $0x48] sm:$0xff]
    %v602 = vld [vmem:[#allocation16 + $0x50] sm:$0xff]
    %v603 = vld [vmem:[#allocation16 + $0x58] sm:$0xff]
    %v604 = vld [vmem:[#allocation16 + $0x60] sm:$0xff]
    %v605 = vld [vmem:[#allocation16 + $0x68] sm:$0xff]
    %v606 = vld [vmem:[#allocation16 + $0x70] sm:$0xff]
    %v607 = vld [vmem:[#allocation16 + $0x78] sm:$0xff]
    %608 = vmatprep.subr.mxu0 0.0
    %609 = vmatpush1.msra.mxu0 %v592
    %610 = vmatprep.subr.mxu0 0.0
    %611 = vmatpush1.msra.mxu0 %v593
    %612 = vmatprep.subr.mxu0 0.0
    %613 = vmatpush1.msra.mxu0 %v594
    %614 = vmatprep.subr.mxu0 0.0
    %615 = vmatpush1.msra.mxu0 %v595
    %616 = vmatprep.subr.mxu0 0.0
    %617 = vmatpush1.msra.mxu0 %v596
    %618 = vmatprep.subr.mxu0 0.0
    %619 = vmatpush1.msra.mxu0 %v597
    %620 = vmatprep.subr.mxu0 0.0
    %621 = vmatpush1.msra.mxu0 %v598
    %622 = vmatprep.subr.mxu0 0.0
    %623 = vmatpush1.msra.mxu0 %v599
    %624 = vmatprep.subr.mxu0 0.0
    %625 = vmatpush1.msra.mxu0 %v600
    %626 = vmatprep.subr.mxu0 0.0
    %627 = vmatpush1.msra.mxu0 %v601
    %628 = vmatprep.subr.mxu0 0.0
    %629 = vmatpush1.msra.mxu0 %v602
    %630 = vmatprep.subr.mxu0 0.0
    %631 = vmatpush1.msra.mxu0 %v603
    %632 = vmatprep.subr.mxu0 0.0
    %633 = vmatpush1.msra.mxu0 %v604
    %634 = vmatprep.subr.mxu0 0.0
    %635 = vmatpush1.msra.mxu0 %v605
    %636 = vmatprep.subr.mxu0 0.0
    %637 = vmatpush1.msra.mxu0 %v606
    %638 = vmatprep.subr.mxu0 0.0
    %639 = vmatpush1.msra.mxu0 %v607
    %640 = vmatprep.subr.mxu0 0.0
    %641 = vmatpush1.msra.mxu0 0.0
    %642 = vmatprep.subr.mxu0 0.0
    %643 = vmatpush1.msra.mxu0 0.0
    %644 = vmatprep.subr.mxu0 0.0
    %645 = vmatpush1.msra.mxu0 0.0
    %646 = vmatprep.subr.mxu0 0.0
    %647 = vmatpush1.msra.mxu0 0.0
    %648 = vmatprep.subr.mxu0 0.0
    %649 = vmatpush1.msra.mxu0 0.0
    %650 = vmatprep.subr.mxu0 0.0
    %651 = vmatpush1.msra.mxu0 0.0
    %652 = vmatprep.subr.mxu0 0.0
    %653 = vmatpush1.msra.mxu0 0.0
    %654 = vmatprep.subr.mxu0 0.0
    %655 = vmatpush1.msra.mxu0 0.0
    %656 = vmatprep.subr.mxu0 0.0
    %657 = vmatpush1.msra.mxu0 0.0
    %658 = vmatprep.subr.mxu0 0.0
    %659 = vmatpush1.msra.mxu0 0.0
    %660 = vmatprep.subr.mxu0 0.0
    %661 = vmatpush1.msra.mxu0 0.0
    %662 = vmatprep.subr.mxu0 0.0
    %663 = vmatpush1.msra.mxu0 0.0
    %664 = vmatprep.subr.mxu0 0.0
    %665 = vmatpush1.msra.mxu0 0.0
    %666 = vmatprep.subr.mxu0 0.0
    %667 = vmatpush1.msra.mxu0 0.0
    %668 = vmatprep.subr.mxu0 0.0
    %669 = vmatpush1.msra.mxu0 0.0
    %670 = vmatprep.subr.mxu0 0.0
    %671 = vmatpush1.msra.mxu0 0.0
    %672 = vmatprep.mubr.f32.mxu0 0.0
    %673 = vmatmul.mubr.f32.gmra.mrb[0].mxu0 %v590
    %v674 = vpop.f32.mrb[0].mxu0
    %v675 = vadd.f32 0.0, %v674
    %v676 = vpop.f32.mrb[0].mxu0
    %677 = vmatprep.mubr.f32.mxu0 0.0
    %678 = vmatmul.mubr.f32.gmra.mrb[0].mxu0 %v591
    %v679 = vpop.f32.mrb[0].mxu0
    %v680 = vadd.f32 0.0, %v679
    %v681 = vpop.f32.mrb[0].mxu0
    %682 = vdwg.mxu0
    %683 = vst.msk [vmem:[#allocation17] sm:$0xff] %vm191, %v675
    %684 = vst.msk [vmem:[#allocation17 + $0x8] sm:$0xff] %vm191, %v680
    // Predicated region
    $region74: #{tpu_custom_call.1} parent=1 // pred_check
      _
    $region75: #{tpu_custom_call.1} parent=1 // pred_check_branch
      %686 = sbr.rel (0) target = $region77
    $region76: #{tpu_custom_call.1} parent=1 // pred_region
      %s688 = ssub.s32 256, 256
      %689 = vsyncadd [#allocation4], %s688
      %s690 = sshll.u32 [#allocation17], 4
      %s691 = int_to_ptr.vmem [resolvable:$true] %s690
      %696 = dma.vmem_to_hbm [thread:$0]  %s691, 256, %s9, [#allocation4], 128, 128, 8
    $region77: #{tpu_custom_call.1} parent=1 // pred_fallthru
      _
    // Predicated region
    $region78: #{tpu_custom_call.1} parent=1 // pred_check
      _
    $region79: #{tpu_custom_call.1} parent=1 // pred_check_branch
      %698 = sbr.rel (0) target = $region81
    $region80: #{tpu_custom_call.1} parent=1 // pred_region
      %699 = dma.done [#allocation4], 256
    $region81: #{tpu_custom_call.1} parent=1 // pred_fallthru
      _
    %700 = vsyncpa [#allocation3], 1
    %701 = vsyncpa [#allocation6], 1
    %702 = vsyncpa [#allocation9], 1
    %703 = vsyncpa [#allocation12], 1
    %704 = vsyncpa [#allocation15], 1
    %705 = vsyncpa [#allocation4], 1

</llo_original>
